<compile_context>
chip_gen: v7x
topology: tpu7x:2x2x1
jax: 0.10.0
libtpu: 0.0.40
codegen_flags: <defaults>
</compile_context>

<pallas_src>
import functools

import jax
import jax.numpy as jnp
from jax.experimental import pallas as pl
from jax.experimental.pallas import tpu as pltpu


def _round_up(x: int, m: int) -> int:
    return (x + m - 1) // m * m


def _rnd_mlp_kernel(x_ref, w0_ref, b0_ref, w1_ref, b1_ref, w2_ref, b2_ref,
                    out_ref, *, precision):
    """3-layer MLP (Linear+ReLU x3) for every encoder present in this block.

    x_ref:    (TM, obs_dim)          batch tile (shared by all encoders in block)
    w{l}_ref: (E, in_pad, out_pad)   E in {1, 2} stacked encoder weights
    b{l}_ref: (E, 1, out_pad)
    out_ref:  (E, TM, out2_pad)
    """
    wt = w0_ref.dtype
    x = x_ref[...].astype(wt)
    for e in range(w0_ref.shape[0]):          # static unroll over encoders
        h = jnp.dot(x, w0_ref[e], precision=precision,
                    preferred_element_type=jnp.float32) + b0_ref[e]
        h = jnp.maximum(h, 0.0)
        h = jnp.dot(h.astype(wt), w1_ref[e], precision=precision,
                    preferred_element_type=jnp.float32) + b1_ref[e]
        h = jnp.maximum(h, 0.0)
        h = jnp.dot(h.astype(wt), w2_ref[e], precision=precision,
                    preferred_element_type=jnp.float32) + b2_ref[e]
        h = jnp.maximum(h, 0.0)
        out_ref[e] = h.astype(out_ref.dtype)


def prepare_rnd_params(predictor_params, target_params, dtype=jnp.float32):
    """One-time packing of both encoders' parameters for the fused kernel.

    Pads every layer's output dim up to a multiple of 128 lanes (zero columns /
    zero biases -> exact since ReLU(0)=0) and the K dims of layers 1/2 to the
    previous padded width (zero rows -> exact), then stacks predictor/target
    along a leading axis of size 2.  Call ONCE at init, NOT per forward.

    Returns (packed_params_dict, feat_dim).
    """
    obs_dim = predictor_params["w0"].shape[0]
    out_dims = [predictor_params[f"w{l}"].shape[1] for l in range(3)]
    out_pads = [_round_up(d, 128) for d in out_dims]
    in_pads = [obs_dim, out_pads[0], out_pads[1]]

    packed = {}
    for l in range(3):
        ws, bs = [], []
        for p in (predictor_params, target_params):
            w = p[f"w{l}"].astype(dtype)
            b = p[f"b{l}"].astype(dtype)
            w_p = jnp.zeros((in_pads[l], out_pads[l]), dtype)
            w_p = w_p.at[:w.shape[0], :w.shape[1]].set(w)
            b_p = jnp.zeros((1, out_pads[l]), dtype).at[:, :b.shape[1]].set(b)
            ws.append(w_p)
            bs.append(b_p)
        packed[f"w{l}"] = jnp.stack(ws)   # (2, in_pad, out_pad)
        packed[f"b{l}"] = jnp.stack(bs)   # (2, 1, out_pad)
    return packed, out_dims[-1]


@functools.partial(
    jax.jit, static_argnames=("feat_dim", "tm", "slice_output", "precision"))
def rnd_forward(obs, packed, feat_dim, *, tm=512, slice_output=True,
                precision=None):
    """RndNetwork.forward: returns (predict_feature, target_feature)."""
    B, obs_dim = obs.shape
    w0, b0 = packed["w0"], packed["b0"]
    w1, b1 = packed["w1"], packed["b1"]
    w2, b2 = packed["w2"], packed["b2"]
    assert w0.shape[1] == obs_dim, "packed params built for a different obs_dim"
    h2_pad = w2.shape[2]

    # --- batch tiling: equalized tiles, rounded to 8 sublanes ----------------
    nb = max(1, -(-B // tm))                 # number of batch tiles
    tm_eff = _round_up(-(-B // nb), 8)       # rows per tile (minimal tail pad)
    b_pad = tm_eff * nb
    x = obs
    if b_pad != B:                           # only copy obs when B is ragged
        x = jnp.zeros((b_pad, obs_dim), obs.dtype).at[:B].set(obs)

    kernel = functools.partial(_rnd_mlp_kernel, precision=precision)
    cparams = pltpu.CompilerParams(
        dimension_semantics=("parallel",),
        vmem_limit_bytes=32 * 1024 * 1024,
    )

    if nb == 1:
        # Single batch tile: the encoder axis is the only parallelism left, so
        # grid over the 2 encoders (v7x megacore -> one encoder per TensorCore).
        # The obs block index is constant, so it is fetched once per core.
        grid = (2,)
        x_spec = pl.BlockSpec((tm_eff, obs_dim), lambda e: (0, 0))

        def enc_spec(a):
            return pl.BlockSpec((1,) + a.shape[1:], lambda e: (e, 0, 0))

        out_spec = pl.BlockSpec((1, tm_eff, h2_pad), lambda e: (e, 0, 0))
    else:
        # Fused path: both encoders in one body, grid over batch tiles only.
        # obs is fetched exactly once; weights keep a constant block index and
        # stay resident in VMEM across all batch tiles.
        grid = (nb,)
        x_spec = pl.BlockSpec((tm_eff, obs_dim), lambda i: (i, 0))

        def enc_spec(a):
            return pl.BlockSpec(a.shape, lambda i: (0, 0, 0))

        out_spec = pl.BlockSpec((2, tm_eff, h2_pad), lambda i: (0, i, 0))

    in_specs = [x_spec, enc_spec(w0), enc_spec(b0), enc_spec(w1),
                enc_spec(b1), enc_spec(w2), enc_spec(b2)]

    out = pl.pallas_call(
        kernel,
        out_shape=jax.ShapeDtypeStruct((2, b_pad, h2_pad), jnp.float32),
        grid=grid,
        in_specs=in_specs,
        out_specs=out_spec,
        compiler_params=cparams,
    )(x, w0, b0, w1, b1, w2, b2)

    predict_feature = out[0]
    target_feature = jax.lax.stop_gradient(out[1])   # torch.no_grad() parity
    if slice_output:
        predict_feature = predict_feature[:B, :feat_dim]
        target_feature = target_feature[:B, :feat_dim]
    return predict_feature, target_feature


# --------------------------------------------------------------------------- #
# Test harness: deterministic synthetic params + pure-JAX reference.
# --------------------------------------------------------------------------- #
def make_fc_encoder_params(key, obs_dim, hidden_size_list):
    """Deterministic synthetic init. Weights stored as (in, out) = nn.Linear weight.T."""
    dims = [obs_dim] + list(hidden_size_list)
    params = {}
    for li in range(3):
        key, kw, kb = jax.random.split(key, 3)
        fan_in, fan_out = dims[li], dims[li + 1]
        bound = 1.0 / jnp.sqrt(fan_in)
        params[f"w{li}"] = jax.random.uniform(
            kw, (fan_in, fan_out), jnp.float32, -bound, bound)
        params[f"b{li}"] = jax.random.uniform(
            kb, (1, fan_out), jnp.float32, -bound, bound)
    return params


def _fc_encoder_ref(x, p):
    h = jnp.maximum(x @ p["w0"] + p["b0"], 0.0)
    h = jnp.maximum(h @ p["w1"] + p["b1"], 0.0)
    h = jnp.maximum(h @ p["w2"] + p["b2"], 0.0)
    return h


if __name__ == "__main__":
    OBS_DIM = 32
    HIDDEN = [64, 64, 32]

    root = jax.random.PRNGKey(0)
    k_obs, k_pred, k_tgt, k_obs2 = jax.random.split(root, 4)

    predictor_params = make_fc_encoder_params(k_pred, OBS_DIM, HIDDEN)
    target_params = make_fc_encoder_params(k_tgt, OBS_DIM, HIDDEN)
    # One-time packing (hoisted out of the forward path).
    packed, feat_dim = prepare_rnd_params(predictor_params, target_params)

    # Path 1: tiny batch -> single tile, encoder-parallel grid (v7x megacore).
    obs_small = jax.random.normal(k_obs, (8, OBS_DIM), dtype=jnp.float32)
    pred_s, tgt_s = rnd_forward(obs_small, packed, feat_dim=feat_dim)
    jax.block_until_ready((pred_s, tgt_s))

    # Path 2: larger ragged batch -> fused-encoder body, batch-tiled grid.
    obs_big = jax.random.normal(k_obs2, (300, OBS_DIM), dtype=jnp.float32)
    pred_b, tgt_b = rnd_forward(obs_big, packed, feat_dim=feat_dim, tm=128)
    jax.block_until_ready((pred_b, tgt_b))

    for obs, pred, tgt in ((obs_small, pred_s, tgt_s), (obs_big, pred_b, tgt_b)):
        ref_pred = _fc_encoder_ref(obs, predictor_params)
        ref_tgt = _fc_encoder_ref(obs, target_params)
        assert pred.shape == (obs.shape[0], HIDDEN[-1])
        assert tgt.shape == (obs.shape[0], HIDDEN[-1])
        assert jnp.allclose(pred, ref_pred, atol=1e-5, rtol=1e-5)
        assert jnp.allclose(tgt, ref_tgt, atol=1e-5, rtol=1e-5)

    print("KERNEL_OK")
</pallas_src>

<mosaic_0001>
module attributes {stable_mosaic.version = 11 : i64} {
  func.func @_rnd_mlp_kernel(%arg0: i32, %arg1: memref<8x32xf32, #tpu.memory_space<vmem>>, %arg2: memref<1x32x128xf32, #tpu.memory_space<vmem>>, %arg3: memref<1x1x128xf32, #tpu.memory_space<vmem>>, %arg4: memref<1x128x128xf32, #tpu.memory_space<vmem>>, %arg5: memref<1x1x128xf32, #tpu.memory_space<vmem>>, %arg6: memref<1x128x128xf32, #tpu.memory_space<vmem>>, %arg7: memref<1x1x128xf32, #tpu.memory_space<vmem>>, %arg8: memref<1x8x128xf32, #tpu.memory_space<vmem>>) attributes {dimension_semantics = [#tpu.dimension_semantics<parallel>], iteration_bounds = array<i64: 2>, scalar_prefetch = 0 : i64, scratch_operands = 0 : i64, tpu.core_type = #tpu.core_type<tc>, window_params = [{pipeline_mode = #tpu.pipeline_mode<synchronous>, transform_indices = @transform_0, window_bounds = array<i64: 8, 32>}, {transform_indices = @transform_1, window_bounds = array<i64: 1, 32, 128>}, {transform_indices = @transform_2, window_bounds = array<i64: 1, 1, 128>}, {transform_indices = @transform_3, window_bounds = array<i64: 1, 128, 128>}, {transform_indices = @transform_4, window_bounds = array<i64: 1, 1, 128>}, {transform_indices = @transform_5, window_bounds = array<i64: 1, 128, 128>}, {transform_indices = @transform_6, window_bounds = array<i64: 1, 1, 128>}, {transform_indices = @transform_7, window_bounds = array<i64: 1, 8, 128>}]} {
    %c0 = arith.constant 0 : index
    %c0_0 = arith.constant 0 : index
    %0 = vector.load %arg1[%c0, %c0_0] : memref<8x32xf32, #tpu.memory_space<vmem>>, vector<8x32xf32>
    %c0_1 = arith.constant 0 : index
    %c0_2 = arith.constant 0 : index
    %c0_3 = arith.constant 0 : index
    %1 = vector.load %arg2[%c0_1, %c0_2, %c0_3] : memref<1x32x128xf32, #tpu.memory_space<vmem>>, vector<1x32x128xf32>
    %2 = vector.shape_cast %1 : vector<1x32x128xf32> to vector<32x128xf32>
    %cst = arith.constant dense<0.000000e+00> : vector<8x128xf32>
    %3 = tpu.matmul %0, %2, %cst {dimension_numbers = #tpu.dot_dimension_numbers<[1], [0], [0], [1], [0, 0, 1, 1], [], []>} : vector<8x32xf32>, vector<32x128xf32>, vector<8x128xf32> -> vector<8x128xf32>
    %c0_4 = arith.constant 0 : index
    %c0_5 = arith.constant 0 : index
    %c0_6 = arith.constant 0 : index
    %4 = vector.load %arg3[%c0_4, %c0_5, %c0_6] : memref<1x1x128xf32, #tpu.memory_space<vmem>>, vector<1x1x128xf32>
    %5 = vector.shape_cast %4 : vector<1x1x128xf32> to vector<1x128xf32>
    %6 = vector.broadcast %5 : vector<1x128xf32> to vector<8x128xf32>
    %7 = arith.addf %3, %6 : vector<8x128xf32>
    %cst_7 = arith.constant 0.000000e+00 : f32
    %8 = vector.broadcast %cst_7 : f32 to vector<8x128xf32>
    %9 = arith.maximumf %7, %8 : vector<8x128xf32>
    %c0_8 = arith.constant 0 : index
    %c0_9 = arith.constant 0 : index
    %c0_10 = arith.constant 0 : index
    %10 = vector.load %arg4[%c0_8, %c0_9, %c0_10] : memref<1x128x128xf32, #tpu.memory_space<vmem>>, vector<1x128x128xf32>
    %11 = vector.shape_cast %10 : vector<1x128x128xf32> to vector<128x128xf32>
    %cst_11 = arith.constant dense<0.000000e+00> : vector<8x128xf32>
    %12 = tpu.matmul %9, %11, %cst_11 {dimension_numbers = #tpu.dot_dimension_numbers<[1], [0], [0], [1], [0, 0, 1, 1], [], []>} : vector<8x128xf32>, vector<128x128xf32>, vector<8x128xf32> -> vector<8x128xf32>
    %c0_12 = arith.constant 0 : index
    %c0_13 = arith.constant 0 : index
    %c0_14 = arith.constant 0 : index
    %13 = vector.load %arg5[%c0_12, %c0_13, %c0_14] : memref<1x1x128xf32, #tpu.memory_space<vmem>>, vector<1x1x128xf32>
    %14 = vector.shape_cast %13 : vector<1x1x128xf32> to vector<1x128xf32>
    %15 = vector.broadcast %14 : vector<1x128xf32> to vector<8x128xf32>
    %16 = arith.addf %12, %15 : vector<8x128xf32>
    %cst_15 = arith.constant 0.000000e+00 : f32
    %17 = vector.broadcast %cst_15 : f32 to vector<8x128xf32>
    %18 = arith.maximumf %16, %17 : vector<8x128xf32>
    %c0_16 = arith.constant 0 : index
    %c0_17 = arith.constant 0 : index
    %c0_18 = arith.constant 0 : index
    %19 = vector.load %arg6[%c0_16, %c0_17, %c0_18] : memref<1x128x128xf32, #tpu.memory_space<vmem>>, vector<1x128x128xf32>
    %20 = vector.shape_cast %19 : vector<1x128x128xf32> to vector<128x128xf32>
    %cst_19 = arith.constant dense<0.000000e+00> : vector<8x128xf32>
    %21 = tpu.matmul %18, %20, %cst_19 {dimension_numbers = #tpu.dot_dimension_numbers<[1], [0], [0], [1], [0, 0, 1, 1], [], []>} : vector<8x128xf32>, vector<128x128xf32>, vector<8x128xf32> -> vector<8x128xf32>
    %c0_20 = arith.constant 0 : index
    %c0_21 = arith.constant 0 : index
    %c0_22 = arith.constant 0 : index
    %22 = vector.load %arg7[%c0_20, %c0_21, %c0_22] : memref<1x1x128xf32, #tpu.memory_space<vmem>>, vector<1x1x128xf32>
    %23 = vector.shape_cast %22 : vector<1x1x128xf32> to vector<1x128xf32>
    %24 = vector.broadcast %23 : vector<1x128xf32> to vector<8x128xf32>
    %25 = arith.addf %21, %24 : vector<8x128xf32>
    %cst_23 = arith.constant 0.000000e+00 : f32
    %26 = vector.broadcast %cst_23 : f32 to vector<8x128xf32>
    %27 = arith.maximumf %25, %26 : vector<8x128xf32>
    %c0_24 = arith.constant 0 : index
    %c0_25 = arith.constant 0 : index
    %c0_26 = arith.constant 0 : index
    %28 = vector.load %arg8[%c0_24, %c0_25, %c0_26] : memref<1x8x128xf32, #tpu.memory_space<vmem>>, vector<1x8x128xf32>
    %29 = vector.shape_cast %28 : vector<1x8x128xf32> to vector<8x128xf32>
    %30 = vector.shape_cast %27 : vector<8x128xf32> to vector<1x8x128xf32>
    tpu.vector_store %arg8[%c0_24, %c0_25, %c0_26], %30 {strides = array<i32>} : memref<1x8x128xf32, #tpu.memory_space<vmem>>, vector<1x8x128xf32>,
    return
  }
  func.func @transform_0(%arg0: i32) -> (i32, i32) {
    %c0_i32 = arith.constant 0 : i32
    %c0_i32_0 = arith.constant 0 : i32
    %c0_i32_1 = arith.constant 0 : i32
    return %c0_i32, %c0_i32_0 : i32, i32
  }
  func.func @transform_1(%arg0: i32) -> (i32, i32, i32) {
    %c0_i32 = arith.constant 0 : i32
    %c0_i32_0 = arith.constant 0 : i32
    %c0_i32_1 = arith.constant 0 : i32
    return %arg0, %c0_i32, %c0_i32_0 : i32, i32, i32
  }
  func.func @transform_2(%arg0: i32) -> (i32, i32, i32) {
    %c0_i32 = arith.constant 0 : i32
    %c0_i32_0 = arith.constant 0 : i32
    %c0_i32_1 = arith.constant 0 : i32
    return %arg0, %c0_i32, %c0_i32_0 : i32, i32, i32
  }
  func.func @transform_3(%arg0: i32) -> (i32, i32, i32) {
    %c0_i32 = arith.constant 0 : i32
    %c0_i32_0 = arith.constant 0 : i32
    %c0_i32_1 = arith.constant 0 : i32
    return %arg0, %c0_i32, %c0_i32_0 : i32, i32, i32
  }
  func.func @transform_4(%arg0: i32) -> (i32, i32, i32) {
    %c0_i32 = arith.constant 0 : i32
    %c0_i32_0 = arith.constant 0 : i32
    %c0_i32_1 = arith.constant 0 : i32
    return %arg0, %c0_i32, %c0_i32_0 : i32, i32, i32
  }
  func.func @transform_5(%arg0: i32) -> (i32, i32, i32) {
    %c0_i32 = arith.constant 0 : i32
    %c0_i32_0 = arith.constant 0 : i32
    %c0_i32_1 = arith.constant 0 : i32
    return %arg0, %c0_i32, %c0_i32_0 : i32, i32, i32
  }
  func.func @transform_6(%arg0: i32) -> (i32, i32, i32) {
    %c0_i32 = arith.constant 0 : i32
    %c0_i32_0 = arith.constant 0 : i32
    %c0_i32_1 = arith.constant 0 : i32
    return %arg0, %c0_i32, %c0_i32_0 : i32, i32, i32
  }
  func.func @transform_7(%arg0: i32) -> (i32, i32, i32) {
    %c0_i32 = arith.constant 0 : i32
    %c0_i32_0 = arith.constant 0 : i32
    %c0_i32_1 = arith.constant 0 : i32
    return %arg0, %c0_i32, %c0_i32_0 : i32, i32, i32
  }
}

</mosaic_0001>

<llo_original>
// kernel: rnd_forward.1
$region0: #{rnd_forward.1}
  #allocation0 [shape = 'u32[]', space=smem, size = 0x4, offset = 0x4, fixed_abs, tag = 'smem constant byte address 0x4 - core index']
  #allocation1 [shape = 'u32[144,128]{1,0:T(1,128)}', space=vmem, size = 0x12000, scoped, tag = 'internal scratch']
  %s0 = inlined_call_operand.hbm [shape: f32[8,32], index: 0, kind: input, shape index: {}]
  %s1 = inlined_call_operand.hbm [shape: f32[2,32,128], index: 1, kind: input, shape index: {}]
  %s2 = inlined_call_operand.vmem [shape: f32[2,1,128], index: 2, kind: input, shape index: {}]
  %s3 = inlined_call_operand.hbm [shape: f32[2,128,128], index: 3, kind: input, shape index: {}]
  %s4 = inlined_call_operand.vmem [shape: f32[2,1,128], index: 4, kind: input, shape index: {}]
  %s5 = inlined_call_operand.hbm [shape: f32[2,128,128], index: 5, kind: input, shape index: {}]
  %s6 = inlined_call_operand.vmem [shape: f32[2,1,128], index: 6, kind: input, shape index: {}]
  %s7 = inlined_call_operand.vmem [shape: f32[2,8,128], index: 7, kind: output, shape index: {}]
  %s8 = sld [smem:[#allocation0]]
  $region77: #{rnd_forward.1} parent=0
    _
  %s10 = ssub.s32 1, %s8
  %s11 = scalar_select 0, %s10, %s8
  $region1: #{rnd_forward.1} parent=0
    #allocation2 [shape = 'u8[4096]{0}', space=vmem, size = 0x1000, scoped, tag = 'input window, operand 0, single buffered']
    #allocation3 [shape = 's32[2]{0}', space=sflag, size = 0x8, scoped, tag = 'scoped memory for rnd_forward.1']
    #allocation4 [shape = 'u8[32768]{0}', space=vmem, size = 0x8000, scoped, tag = 'input window, operand 1']
    #allocation5 [shape = 's32[2]{0}', space=sflag, size = 0x8, scoped, tag = 'scoped memory for rnd_forward.1']
    #allocation6 [shape = 'u8[131072]{0}', space=vmem, size = 0x20000, scoped, tag = 'input window, operand 3']
    #allocation7 [shape = 'u8[131072]{0}', space=vmem, size = 0x20000, scoped, tag = 'input window, operand 5']
    #allocation8 [shape = 's32[2]{0}', space=sflag, size = 0x8, scoped, tag = 'scoped memory for rnd_forward.1']
    %12 = vsyncpa [#allocation3], 0
    %13 = vsyncpa [#allocation5], 0
    %s14 = scalar_lea.sflag [#allocation5], 1
    %15 = vsyncpa %s14, 0
    %16 = vsyncpa [#allocation8], 0
    %s17 = scalar_lea.sflag [#allocation8], 1
    %18 = vsyncpa %s17, 0
    loop: start=0, step=1, limit=4
    $region2: #{rnd_forward.1} parent=1 // loop_pre_header
      _
    $region3: #{rnd_forward.1} parent=1 // loop_header
      %s20 = sphi 0, %s24
      %p21 = scmp.ge.s32.totalorder %s20, 4
      %s28 = sphi 0, %s28
      %s30 = sphi 0, %s28
      %s31 = sphi 0, %s30
      %s45 = sphi 0, %s31
      %s51 = sphi 0, %s53
      %s54 = sphi 0, %s51
      %s55 = sphi 0, %s54
      %s71 = sphi 0, %s55
      %s77 = sphi 0, %s79
      %s80 = sphi 0, %s77
      %s81 = sphi 0, %s80
      %s97 = sphi 0, %s81
      %s103 = sphi 0, %s105
      %s106 = sphi 0, %s103
      %s107 = sphi 0, %s106
      %s123 = sphi 0, %s107
      %s129 = sphi 0, %s131
      %s132 = sphi 0, %s129
      %s133 = sphi 0, %s132
      %s149 = sphi 0, %s133
      %s155 = sphi 0, %s157
      %s158 = sphi 0, %s155
      %s159 = sphi 0, %s158
      %s175 = sphi 0, %s159
      %s181 = sphi 0, %s183
      %s184 = sphi 0, %s181
      %s185 = sphi 0, %s184
      %s201 = sphi 0, %s185
      %s207 = sphi 0, %s209
      %s210 = sphi 0, %s207
      %s211 = sphi 0, %s210
      %s227 = sphi 0, %s211
    $region4: #{rnd_forward.1} parent=1 // loop_header_branch
      %23 = sbr.rel (%p21) target = $region8
    $region5: #{rnd_forward.1} parent=1 // loop_body
      %s25 = ssub.s32 %s20, 1
      %s26 = ssub.s32 %s20, 2
      %s27 = sadd.s32 %s20, 1
      %s29 = sadd.s32 %s28, 1
      %p32 = scmp.eq.s32.totalorder %s20, 1
      %p33 = scmp.ne.s32.totalorder %s28, %s30
      %p34 = scmp.eq.s32.totalorder %s20, 0
      %p35 = por %p33, %p34
      %p36 = scmp.ne.s32.totalorder %s28, %s30
      %p37 = scmp.eq.s32.totalorder %s25, 1
      %p38 = por %p36, %p37
      %p39 = scmp.ne.s32.totalorder %s30, %s31
      %p40 = scmp.eq.s32.totalorder %s25, 0
      %p41 = por %p39, %p40
      %p42 = scmp.ne.s32.totalorder %s30, %s31
      %p43 = scmp.eq.s32.totalorder %s26, 1
      %p44 = por %p42, %p43
      %p46 = scmp.ne.s32.totalorder %s31, %s45
      %p47 = scmp.eq.s32.totalorder %s26, 0
      %p48 = por %p46, %p47
      %s49 = ssub.s32 %s20, %s27
      %p50 = scmp.eq.s32.totalorder %s49, 0
      %s52 = sadd.s32 %s51, 1
      %s53 = scalar_select %p50, %s51, %s52
      %p56 = pneg %p50
      %p57 = scmp.eq.s32.totalorder %s20, 1
      %p58 = por %p56, %p57
      %p59 = scmp.ne.s32.totalorder %s51, %s54
      %p60 = scmp.eq.s32.totalorder %s20, 0
      %p61 = por %p59, %p60
      %p62 = scmp.ne.s32.totalorder %s51, %s54
      %p63 = scmp.eq.s32.totalorder %s25, 1
      %p64 = por %p62, %p63
      %p65 = scmp.ne.s32.totalorder %s54, %s55
      %p66 = scmp.eq.s32.totalorder %s25, 0
      %p67 = por %p65, %p66
      %p68 = scmp.ne.s32.totalorder %s54, %s55
      %p69 = scmp.eq.s32.totalorder %s26, 1
      %p70 = por %p68, %p69
      %p72 = scmp.ne.s32.totalorder %s55, %s71
      %p73 = scmp.eq.s32.totalorder %s26, 0
      %p74 = por %p72, %p73
      %s75 = ssub.s32 %s20, %s27
      %p76 = scmp.eq.s32.totalorder %s75, 0
      %s78 = sadd.s32 %s77, 1
      %s79 = scalar_select %p76, %s77, %s78
      %p82 = pneg %p76
      %p83 = scmp.eq.s32.totalorder %s20, 1
      %p84 = por %p82, %p83
      %p85 = scmp.ne.s32.totalorder %s77, %s80
      %p86 = scmp.eq.s32.totalorder %s20, 0
      %p87 = por %p85, %p86
      %p88 = scmp.ne.s32.totalorder %s77, %s80
      %p89 = scmp.eq.s32.totalorder %s25, 1
      %p90 = por %p88, %p89
      %p91 = scmp.ne.s32.totalorder %s80, %s81
      %p92 = scmp.eq.s32.totalorder %s25, 0
      %p93 = por %p91, %p92
      %p94 = scmp.ne.s32.totalorder %s80, %s81
      %p95 = scmp.eq.s32.totalorder %s26, 1
      %p96 = por %p94, %p95
      %p98 = scmp.ne.s32.totalorder %s81, %s97
      %p99 = scmp.eq.s32.totalorder %s26, 0
      %p100 = por %p98, %p99
      %s101 = ssub.s32 %s20, %s27
      %p102 = scmp.eq.s32.totalorder %s101, 0
      %s104 = sadd.s32 %s103, 1
      %s105 = scalar_select %p102, %s103, %s104
      %p108 = pneg %p102
      %p109 = scmp.eq.s32.totalorder %s20, 1
      %p110 = por %p108, %p109
      %p111 = scmp.ne.s32.totalorder %s103, %s106
      %p112 = scmp.eq.s32.totalorder %s20, 0
      %p113 = por %p111, %p112
      %p114 = scmp.ne.s32.totalorder %s103, %s106
      %p115 = scmp.eq.s32.totalorder %s25, 1
      %p116 = por %p114, %p115
      %p117 = scmp.ne.s32.totalorder %s106, %s107
      %p118 = scmp.eq.s32.totalorder %s25, 0
      %p119 = por %p117, %p118
      %p120 = scmp.ne.s32.totalorder %s106, %s107
      %p121 = scmp.eq.s32.totalorder %s26, 1
      %p122 = por %p120, %p121
      %p124 = scmp.ne.s32.totalorder %s107, %s123
      %p125 = scmp.eq.s32.totalorder %s26, 0
      %p126 = por %p124, %p125
      %s127 = ssub.s32 %s20, %s27
      %p128 = scmp.eq.s32.totalorder %s127, 0
      %s130 = sadd.s32 %s129, 1
      %s131 = scalar_select %p128, %s129, %s130
      %p134 = pneg %p128
      %p135 = scmp.eq.s32.totalorder %s20, 1
      %p136 = por %p134, %p135
      %p137 = scmp.ne.s32.totalorder %s129, %s132
      %p138 = scmp.eq.s32.totalorder %s20, 0
      %p139 = por %p137, %p138
      %p140 = scmp.ne.s32.totalorder %s129, %s132
      %p141 = scmp.eq.s32.totalorder %s25, 1
      %p142 = por %p140, %p141
      %p143 = scmp.ne.s32.totalorder %s132, %s133
      %p144 = scmp.eq.s32.totalorder %s25, 0
      %p145 = por %p143, %p144
      %p146 = scmp.ne.s32.totalorder %s132, %s133
      %p147 = scmp.eq.s32.totalorder %s26, 1
      %p148 = por %p146, %p147
      %p150 = scmp.ne.s32.totalorder %s133, %s149
      %p151 = scmp.eq.s32.totalorder %s26, 0
      %p152 = por %p150, %p151
      %s153 = ssub.s32 %s20, %s27
      %p154 = scmp.eq.s32.totalorder %s153, 0
      %s156 = sadd.s32 %s155, 1
      %s157 = scalar_select %p154, %s155, %s156
      %p160 = pneg %p154
      %p161 = scmp.eq.s32.totalorder %s20, 1
      %p162 = por %p160, %p161
      %p163 = scmp.ne.s32.totalorder %s155, %s158
      %p164 = scmp.eq.s32.totalorder %s20, 0
      %p165 = por %p163, %p164
      %p166 = scmp.ne.s32.totalorder %s155, %s158
      %p167 = scmp.eq.s32.totalorder %s25, 1
      %p168 = por %p166, %p167
      %p169 = scmp.ne.s32.totalorder %s158, %s159
      %p170 = scmp.eq.s32.totalorder %s25, 0
      %p171 = por %p169, %p170
      %p172 = scmp.ne.s32.totalorder %s158, %s159
      %p173 = scmp.eq.s32.totalorder %s26, 1
      %p174 = por %p172, %p173
      %p176 = scmp.ne.s32.totalorder %s159, %s175
      %p177 = scmp.eq.s32.totalorder %s26, 0
      %p178 = por %p176, %p177
      %s179 = ssub.s32 %s20, %s27
      %p180 = scmp.eq.s32.totalorder %s179, 0
      %s182 = sadd.s32 %s181, 1
      %s183 = scalar_select %p180, %s181, %s182
      %p186 = pneg %p180
      %p187 = scmp.eq.s32.totalorder %s20, 1
      %p188 = por %p186, %p187
      %p189 = scmp.ne.s32.totalorder %s181, %s184
      %p190 = scmp.eq.s32.totalorder %s20, 0
      %p191 = por %p189, %p190
      %p192 = scmp.ne.s32.totalorder %s181, %s184
      %p193 = scmp.eq.s32.totalorder %s25, 1
      %p194 = por %p192, %p193
      %p195 = scmp.ne.s32.totalorder %s184, %s185
      %p196 = scmp.eq.s32.totalorder %s25, 0
      %p197 = por %p195, %p196
      %p198 = scmp.ne.s32.totalorder %s184, %s185
      %p199 = scmp.eq.s32.totalorder %s26, 1
      %p200 = por %p198, %p199
      %p202 = scmp.ne.s32.totalorder %s185, %s201
      %p203 = scmp.eq.s32.totalorder %s26, 0
      %p204 = por %p202, %p203
      %s205 = ssub.s32 %s20, %s27
      %p206 = scmp.eq.s32.totalorder %s205, 0
      %s208 = sadd.s32 %s207, 1
      %s209 = scalar_select %p206, %s207, %s208
      %p212 = pneg %p206
      %p213 = scmp.eq.s32.totalorder %s20, 1
      %p214 = por %p212, %p213
      %p215 = scmp.ne.s32.totalorder %s207, %s210
      %p216 = scmp.eq.s32.totalorder %s20, 0
      %p217 = por %p215, %p216
      %p218 = scmp.ne.s32.totalorder %s207, %s210
      %p219 = scmp.eq.s32.totalorder %s25, 1
      %p220 = por %p218, %p219
      %p221 = scmp.ne.s32.totalorder %s210, %s211
      %p222 = scmp.eq.s32.totalorder %s25, 0
      %p223 = por %p221, %p222
      %p224 = scmp.ne.s32.totalorder %s210, %s211
      %p225 = scmp.eq.s32.totalorder %s26, 1
      %p226 = por %p224, %p225
      %p228 = scmp.ne.s32.totalorder %s211, %s227
      %p229 = scmp.eq.s32.totalorder %s26, 0
      %p230 = por %p228, %p229
      %p231 = scmp.le.s32.totalorder 1, %s20
      %p232 = scmp.lt.s32.totalorder %s20, 3
      %p233 = pnand %p231, %p232
      %p234 = pneg %p233
      // Predicated region
      $region9: #{rnd_forward.1} parent=5 // pred_check
        _
      $region10: #{rnd_forward.1} parent=5 // pred_check_branch
        %236 = sbr.rel (%p233) target = $region12
      $region11: #{rnd_forward.1} parent=5 // pred_region
        %s237 = ssub.s32 %s20, 1
        // Predicated region
        $region13: #{rnd_forward.1} parent=11 // pred_check
          %p238 = pneg %p41
        $region14: #{rnd_forward.1} parent=11 // pred_check_branch
          %240 = sbr.rel (%p238) target = $region16
        $region15: #{rnd_forward.1} parent=11 // pred_region
          %s242 = ssub.s32 128, 128
          %243 = vsyncadd [#allocation3], %s242
          %s245 = sshll.u32 [#allocation2], 4
          %s246 = int_to_ptr.vmem [resolvable:$true] %s245
          %248 = dma.hbm_to_vmem [thread:$0]  %s0, 128, %s246, [#allocation3]
        $region16: #{rnd_forward.1} parent=11 // pred_fallthru
          _
      $region12: #{rnd_forward.1} parent=5 // pred_fallthru
        _
      %p249 = scmp.lt.s32.totalorder %s20, 2
      // Predicated region
      $region17: #{rnd_forward.1} parent=5 // pred_check
        %p250 = pneg %p249
      $region18: #{rnd_forward.1} parent=5 // pred_check_branch
        %252 = sbr.rel (%p250) target = $region20
      $region19: #{rnd_forward.1} parent=5 // pred_region
        // Predicated region
        $region21: #{rnd_forward.1} parent=19 // pred_check
          %p253 = pneg %p61
        $region22: #{rnd_forward.1} parent=19 // pred_check_branch
          %255 = sbr.rel (%p253) target = $region24
        $region23: #{rnd_forward.1} parent=19 // pred_region
          %s256 = sand.u32 %s20, 1
          %s257 = scalar_lea.sflag [#allocation5], %s256
          %s258 = sand.u32 %s51, 1
          %s259 = smul.addr %s258, 32
          %s260 = scalar_lea.vmem [#allocation4], %s259
          %s262 = ssub.s32 512, 512
          %263 = vsyncadd %s257, %s262
          %s264 = smul.addr %s20, 4
          %s265 = smul.addr %s264, 128
          %s266 = scalar_lea.hbm %s1, %s265
          %s267 = sshll.u32 %s260, 4
          %s268 = int_to_ptr.vmem [resolvable:$true] %s267
          %273 = dma.hbm_to_vmem [thread:$0]  %s266, 512, %s268, %s257, 128, 128, 8
        $region24: #{rnd_forward.1} parent=19 // pred_fallthru
          _
        // Predicated region
        $region25: #{rnd_forward.1} parent=19 // pred_check
          %p274 = pneg %p87
        $region26: #{rnd_forward.1} parent=19 // pred_check_branch
          %276 = sbr.rel (%p274) target = $region28
        $region27: #{rnd_forward.1} parent=19 // pred_region
          %p277 = scmp.lt.s32.totalorder %s20, 1
          %s278 = scalar_select %p277, %s20, 1
          %s279 = scalar_lea.vmem %s2, %s278
        $region28: #{rnd_forward.1} parent=19 // pred_fallthru
          _
        // Predicated region
        $region29: #{rnd_forward.1} parent=19 // pred_check
          %p280 = pneg %p113
        $region30: #{rnd_forward.1} parent=19 // pred_check_branch
          %282 = sbr.rel (%p280) target = $region32
        $region31: #{rnd_forward.1} parent=19 // pred_region
          %s283 = sand.u32 %s20, 1
          %s284 = scalar_lea.sflag [#allocation5], %s283
          %s285 = sand.u32 %s103, 1
          %s286 = smul.addr %s285, 128
          %s287 = scalar_lea.vmem [#allocation6], %s286
          %s289 = ssub.s32 2048, 2048
          %290 = vsyncadd %s284, %s289
          %s291 = smul.addr %s20, 16
          %s292 = smul.addr %s291, 128
          %s293 = scalar_lea.hbm %s3, %s292
          %s294 = sshll.u32 %s287, 4
          %s295 = int_to_ptr.vmem [resolvable:$true] %s294
          %300 = dma.hbm_to_vmem [thread:$0]  %s293, 2048, %s295, %s284, 128, 128, 8
        $region32: #{rnd_forward.1} parent=19 // pred_fallthru
          _
        // Predicated region
        $region33: #{rnd_forward.1} parent=19 // pred_check
          %p301 = pneg %p139
        $region34: #{rnd_forward.1} parent=19 // pred_check_branch
          %303 = sbr.rel (%p301) target = $region36
        $region35: #{rnd_forward.1} parent=19 // pred_region
          %p304 = scmp.lt.s32.totalorder %s20, 1
          %s305 = scalar_select %p304, %s20, 1
          %s306 = scalar_lea.vmem %s4, %s305
        $region36: #{rnd_forward.1} parent=19 // pred_fallthru
          _
        // Predicated region
        $region37: #{rnd_forward.1} parent=19 // pred_check
          %p307 = pneg %p165
        $region38: #{rnd_forward.1} parent=19 // pred_check_branch
          %309 = sbr.rel (%p307) target = $region40
        $region39: #{rnd_forward.1} parent=19 // pred_region
          %s310 = sand.u32 %s155, 1
          %s311 = scalar_lea.sflag [#allocation8], %s310
          %s312 = sand.u32 %s155, 1
          %s313 = smul.addr %s312, 128
          %s314 = scalar_lea.vmem [#allocation7], %s313
          %s316 = ssub.s32 2048, 2048
          %317 = vsyncadd %s311, %s316
          %s318 = smul.addr %s20, 16
          %s319 = smul.addr %s318, 128
          %s320 = scalar_lea.hbm %s5, %s319
          %s321 = sshll.u32 %s314, 4
          %s322 = int_to_ptr.vmem [resolvable:$true] %s321
          %327 = dma.hbm_to_vmem [thread:$0]  %s320, 2048, %s322, %s311, 128, 128, 8
        $region40: #{rnd_forward.1} parent=19 // pred_fallthru
          _
        // Predicated region
        $region41: #{rnd_forward.1} parent=19 // pred_check
          %p328 = pneg %p191
        $region42: #{rnd_forward.1} parent=19 // pred_check_branch
          %330 = sbr.rel (%p328) target = $region44
        $region43: #{rnd_forward.1} parent=19 // pred_region
          %p331 = scmp.lt.s32.totalorder %s20, 1
          %s332 = scalar_select %p331, %s20, 1
          %s333 = scalar_lea.vmem %s6, %s332
        $region44: #{rnd_forward.1} parent=19 // pred_fallthru
          _
      $region20: #{rnd_forward.1} parent=5 // pred_fallthru
        _
      %p334 = scmp.le.s32.totalorder 1, %s20
      %p335 = scmp.lt.s32.totalorder %s20, 3
      %p336 = pnand %p334, %p335
      %p337 = pneg %p336
      // Predicated region
      $region45: #{rnd_forward.1} parent=5 // pred_check
        _
      $region46: #{rnd_forward.1} parent=5 // pred_check_branch
        %339 = sbr.rel (%p336) target = $region48
      $region47: #{rnd_forward.1} parent=5 // pred_region
        %s340 = ssub.s32 %s20, 1
        // Predicated region
        $region49: #{rnd_forward.1} parent=47 // pred_check
          %p341 = pneg %p41
        $region50: #{rnd_forward.1} parent=47 // pred_check_branch
          %343 = sbr.rel (%p341) target = $region52
        $region51: #{rnd_forward.1} parent=47 // pred_region
          %344 = dma.done [#allocation3], 128
        $region52: #{rnd_forward.1} parent=47 // pred_fallthru
          _
        %s345 = sand.u32 %s25, 1
        %s346 = scalar_lea.sflag [#allocation5], %s345
        %s347 = sand.u32 %s54, 1
        %s348 = smul.addr %s347, 32
        %s349 = scalar_lea.vmem [#allocation4], %s348
        // Predicated region
        $region53: #{rnd_forward.1} parent=47 // pred_check
          %p350 = pneg %p67
        $region54: #{rnd_forward.1} parent=47 // pred_check_branch
          %352 = sbr.rel (%p350) target = $region56
        $region55: #{rnd_forward.1} parent=47 // pred_region
          %353 = dma.done %s346, 512
        $region56: #{rnd_forward.1} parent=47 // pred_fallthru
          _
        %s354 = sand.u32 %s25, 1
        %s355 = scalar_lea.sflag [#allocation5], %s354
        %s356 = sand.u32 %s106, 1
        %s357 = smul.addr %s356, 128
        %s358 = scalar_lea.vmem [#allocation6], %s357
        // Predicated region
        $region57: #{rnd_forward.1} parent=47 // pred_check
          %p359 = pneg %p119
        $region58: #{rnd_forward.1} parent=47 // pred_check_branch
          %361 = sbr.rel (%p359) target = $region60
        $region59: #{rnd_forward.1} parent=47 // pred_region
          %362 = dma.done %s355, 2048
        $region60: #{rnd_forward.1} parent=47 // pred_fallthru
          _
        %s363 = sand.u32 %s158, 1
        %s364 = scalar_lea.sflag [#allocation8], %s363
        %s365 = sand.u32 %s158, 1
        %s366 = smul.addr %s365, 128
        %s367 = scalar_lea.vmem [#allocation7], %s366
        // Predicated region
        $region61: #{rnd_forward.1} parent=47 // pred_check
          %p368 = pneg %p171
        $region62: #{rnd_forward.1} parent=47 // pred_check_branch
          %370 = sbr.rel (%p368) target = $region64
        $region63: #{rnd_forward.1} parent=47 // pred_region
          %371 = dma.done %s364, 2048
        $region64: #{rnd_forward.1} parent=47 // pred_fallthru
          _
        %p372 = pneg %p41
        %p373 = pneg %p38
        %s374 = sand.u32 %s25, 1
        %s375 = scalar_lea.sflag [#allocation5], %s374
        %s376 = sand.u32 %s54, 1
        %s377 = smul.addr %s376, 32
        %s378 = scalar_lea.vmem [#allocation4], %s377
        %p379 = pneg %p67
        %p380 = pneg %p64
        %p381 = scmp.lt.s32.totalorder %s25, 1
        %s382 = scalar_select %p381, %s25, 1
        %s383 = scalar_lea.vmem %s2, %s382
        %p384 = pneg %p93
        %p385 = pneg %p90
        %s386 = sand.u32 %s25, 1
        %s387 = scalar_lea.sflag [#allocation5], %s386
        %s388 = sand.u32 %s106, 1
        %s389 = smul.addr %s388, 128
        %s390 = scalar_lea.vmem [#allocation6], %s389
        %p391 = pneg %p119
        %p392 = pneg %p116
        %p393 = scmp.lt.s32.totalorder %s25, 1
        %s394 = scalar_select %p393, %s25, 1
        %s395 = scalar_lea.vmem %s4, %s394
        %p396 = pneg %p145
        %p397 = pneg %p142
        %s398 = sand.u32 %s158, 1
        %s399 = scalar_lea.sflag [#allocation8], %s398
        %s400 = sand.u32 %s158, 1
        %s401 = smul.addr %s400, 128
        %s402 = scalar_lea.vmem [#allocation7], %s401
        %p403 = pneg %p171
        %p404 = pneg %p168
        %p405 = scmp.lt.s32.totalorder %s25, 1
        %s406 = scalar_select %p405, %s25, 1
        %s407 = scalar_lea.vmem %s6, %s406
        %p408 = pneg %p197
        %p409 = pneg %p194
        %p410 = pneg %p223
        %p411 = pneg %p220
        %p412 = scmp.lt.s32.totalorder %s25, 1
        %s413 = scalar_select %p412, %s25, 1
        %s414 = smul.addr %s413, 8
        %s415 = scalar_lea.vmem %s7, %s414
        %p416 = scmp.lt.s32.totalorder %s25, 1
        %s417 = scalar_select %p416, %s25, 1
        %s418 = scalar_lea.vmem %s2, %s417
        %p419 = scmp.lt.s32.totalorder %s25, 1
        %s420 = scalar_select %p419, %s25, 1
        %s421 = scalar_lea.vmem %s4, %s420
        %p422 = scmp.lt.s32.totalorder %s25, 1
        %s423 = scalar_select %p422, %s25, 1
        %s424 = scalar_lea.vmem %s6, %s423
        %p425 = scmp.lt.s32.totalorder %s25, 1
        %s426 = scalar_select %p425, %s25, 1
        %s427 = smul.addr %s426, 8
        %s428 = scalar_lea.vmem %s7, %s427
        %v429 = vld [vmem:[#allocation2] sm:$0xff]
        %v430 = vld [vmem:[%s349] sm:$0xff]
        %v431 = vld [vmem:[%s349 + $0x8] sm:$0xff]
        %v432 = vld [vmem:[%s349 + $0x10] sm:$0xff]
        %v433 = vld [vmem:[%s349 + $0x18] sm:$0xff]
        %v434 = vld [vmem:[%s418] sm:$0x1]
        %v436 = vlaneseq
        %v437 = vshrl.u32 %v436, 7
        %v438 = vsub.s32 0, %v437
        %v439 = vrot.slane %v434, %v438
        %vm441 = vcmask 261120
        %v443 = vsel %vm441, %v429, 0
        %445 = vmatprep.subr.mxu0 0.0
        %446 = vmatpush1.msra.mxu0 %v430
        %447 = vmatprep.subr.mxu0 0.0
        %448 = vmatpush1.msra.mxu0 %v431
        %449 = vmatprep.subr.mxu0 0.0
        %450 = vmatpush1.msra.mxu0 %v432
        %451 = vmatprep.subr.mxu0 0.0
        %452 = vmatpush1.msra.mxu0 %v433
        %453 = vmatprep.subr.mxu0 0.0
        %454 = vmatpush1.msra.mxu0 0.0
        %455 = vmatprep.subr.mxu0 0.0
        %456 = vmatpush1.msra.mxu0 0.0
        %457 = vmatprep.subr.mxu0 0.0
        %458 = vmatpush1.msra.mxu0 0.0
        %459 = vmatprep.subr.mxu0 0.0
        %460 = vmatpush1.msra.mxu0 0.0
        %461 = vmatprep.subr.mxu0 0.0
        %462 = vmatpush1.msra.mxu0 0.0
        %463 = vmatprep.subr.mxu0 0.0
        %464 = vmatpush1.msra.mxu0 0.0
        %465 = vmatprep.subr.mxu0 0.0
        %466 = vmatpush1.msra.mxu0 0.0
        %467 = vmatprep.subr.mxu0 0.0
        %468 = vmatpush1.msra.mxu0 0.0
        %469 = vmatprep.subr.mxu0 0.0
        %470 = vmatpush1.msra.mxu0 0.0
        %471 = vmatprep.subr.mxu0 0.0
        %472 = vmatpush1.msra.mxu0 0.0
        %473 = vmatprep.subr.mxu0 0.0
        %474 = vmatpush1.msra.mxu0 0.0
        %475 = vmatprep.subr.mxu0 0.0
        %476 = vmatpush1.msra.mxu0 0.0
        %477 = vmatprep.subr.mxu0 0.0
        %478 = vmatpush1.msra.mxu0 0.0
        %479 = vmatprep.subr.mxu0 0.0
        %480 = vmatpush1.msra.mxu0 0.0
        %481 = vmatprep.subr.mxu0 0.0
        %482 = vmatpush1.msra.mxu0 0.0
        %483 = vmatprep.subr.mxu0 0.0
        %484 = vmatpush1.msra.mxu0 0.0
        %485 = vmatprep.subr.mxu0 0.0
        %486 = vmatpush1.msra.mxu0 0.0
        %487 = vmatprep.subr.mxu0 0.0
        %488 = vmatpush1.msra.mxu0 0.0
        %489 = vmatprep.subr.mxu0 0.0
        %490 = vmatpush1.msra.mxu0 0.0
        %491 = vmatprep.subr.mxu0 0.0
        %492 = vmatpush1.msra.mxu0 0.0
        %493 = vmatprep.subr.mxu0 0.0
        %494 = vmatpush1.msra.mxu0 0.0
        %495 = vmatprep.subr.mxu0 0.0
        %496 = vmatpush1.msra.mxu0 0.0
        %497 = vmatprep.subr.mxu0 0.0
        %498 = vmatpush1.msra.mxu0 0.0
        %499 = vmatprep.subr.mxu0 0.0
        %500 = vmatpush1.msra.mxu0 0.0
        %501 = vmatprep.subr.mxu0 0.0
        %502 = vmatpush1.msra.mxu0 0.0
        %503 = vmatprep.subr.mxu0 0.0
        %504 = vmatpush1.msra.mxu0 0.0
        %505 = vmatprep.subr.mxu0 0.0
        %506 = vmatpush1.msra.mxu0 0.0
        %507 = vmatprep.subr.mxu0 0.0
        %508 = vmatpush1.msra.mxu0 0.0
        %509 = vmatprep.mubr.f32.mxu0 0.0
        %510 = vmatmul.mubr.f32.gmra.mrb[0].mxu0 %v443
        %v511 = vpop.f32.mrb[0].mxu0
        %v512 = vadd.f32 %v439, %v511
        %v513 = vpop.f32.mrb[0].mxu0
        %514 = vdwg.mxu0
        %v515 = vmax.f32 %v512, 0.0
        %v516 = vld [vmem:[%s358] sm:$0xff]
        %v517 = vld [vmem:[%s358 + $0x8] sm:$0xff]
        %v518 = vld [vmem:[%s358 + $0x10] sm:$0xff]
        %v519 = vld [vmem:[%s358 + $0x18] sm:$0xff]
        %v520 = vld [vmem:[%s358 + $0x20] sm:$0xff]
        %v521 = vld [vmem:[%s358 + $0x28] sm:$0xff]
        %v522 = vld [vmem:[%s358 + $0x30] sm:$0xff]
        %v523 = vld [vmem:[%s358 + $0x38] sm:$0xff]
        %v524 = vld [vmem:[%s358 + $0x40] sm:$0xff]
        %v525 = vld [vmem:[%s358 + $0x48] sm:$0xff]
        %v526 = vld [vmem:[%s358 + $0x50] sm:$0xff]
        %v527 = vld [vmem:[%s358 + $0x58] sm:$0xff]
        %v528 = vld [vmem:[%s358 + $0x60] sm:$0xff]
        %v529 = vld [vmem:[%s358 + $0x68] sm:$0xff]
        %v530 = vld [vmem:[%s358 + $0x70] sm:$0xff]
        %v531 = vld [vmem:[%s358 + $0x78] sm:$0xff]
        %v532 = vld [vmem:[%s421] sm:$0x1]
        %v534 = vlaneseq
        %v535 = vshrl.u32 %v534, 7
        %v536 = vsub.s32 0, %v535
        %v537 = vrot.slane %v532, %v536
        %539 = vmatprep.subr.mxu0 0.0
        %540 = vmatpush1.msra.mxu0 %v516
        %541 = vmatprep.subr.mxu0 0.0
        %542 = vmatpush1.msra.mxu0 %v517
        %543 = vmatprep.subr.mxu0 0.0
        %544 = vmatpush1.msra.mxu0 %v518
        %545 = vmatprep.subr.mxu0 0.0
        %546 = vmatpush1.msra.mxu0 %v519
        %547 = vmatprep.subr.mxu0 0.0
        %548 = vmatpush1.msra.mxu0 %v520
        %549 = vmatprep.subr.mxu0 0.0
        %550 = vmatpush1.msra.mxu0 %v521
        %551 = vmatprep.subr.mxu0 0.0
        %552 = vmatpush1.msra.mxu0 %v522
        %553 = vmatprep.subr.mxu0 0.0
        %554 = vmatpush1.msra.mxu0 %v523
        %555 = vmatprep.subr.mxu0 0.0
        %556 = vmatpush1.msra.mxu0 %v524
        %557 = vmatprep.subr.mxu0 0.0
        %558 = vmatpush1.msra.mxu0 %v525
        %559 = vmatprep.subr.mxu0 0.0
        %560 = vmatpush1.msra.mxu0 %v526
        %561 = vmatprep.subr.mxu0 0.0
        %562 = vmatpush1.msra.mxu0 %v527
        %563 = vmatprep.subr.mxu0 0.0
        %564 = vmatpush1.msra.mxu0 %v528
        %565 = vmatprep.subr.mxu0 0.0
        %566 = vmatpush1.msra.mxu0 %v529
        %567 = vmatprep.subr.mxu0 0.0
        %568 = vmatpush1.msra.mxu0 %v530
        %569 = vmatprep.subr.mxu0 0.0
        %570 = vmatpush1.msra.mxu0 %v531
        %571 = vmatprep.subr.mxu0 0.0
        %572 = vmatpush1.msra.mxu0 0.0
        %573 = vmatprep.subr.mxu0 0.0
        %574 = vmatpush1.msra.mxu0 0.0
        %575 = vmatprep.subr.mxu0 0.0
        %576 = vmatpush1.msra.mxu0 0.0
        %577 = vmatprep.subr.mxu0 0.0
        %578 = vmatpush1.msra.mxu0 0.0
        %579 = vmatprep.subr.mxu0 0.0
        %580 = vmatpush1.msra.mxu0 0.0
        %581 = vmatprep.subr.mxu0 0.0
        %582 = vmatpush1.msra.mxu0 0.0
        %583 = vmatprep.subr.mxu0 0.0
        %584 = vmatpush1.msra.mxu0 0.0
        %585 = vmatprep.subr.mxu0 0.0
        %586 = vmatpush1.msra.mxu0 0.0
        %587 = vmatprep.subr.mxu0 0.0
        %588 = vmatpush1.msra.mxu0 0.0
        %589 = vmatprep.subr.mxu0 0.0
        %590 = vmatpush1.msra.mxu0 0.0
        %591 = vmatprep.subr.mxu0 0.0
        %592 = vmatpush1.msra.mxu0 0.0
        %593 = vmatprep.subr.mxu0 0.0
        %594 = vmatpush1.msra.mxu0 0.0
        %595 = vmatprep.subr.mxu0 0.0
        %596 = vmatpush1.msra.mxu0 0.0
        %597 = vmatprep.subr.mxu0 0.0
        %598 = vmatpush1.msra.mxu0 0.0
        %599 = vmatprep.subr.mxu0 0.0
        %600 = vmatpush1.msra.mxu0 0.0
        %601 = vmatprep.subr.mxu0 0.0
        %602 = vmatpush1.msra.mxu0 0.0
        %603 = vmatprep.mubr.f32.mxu0 0.0
        %604 = vmatmul.mubr.f32.gmra.mrb[0].mxu0 %v515
        %v605 = vpop.f32.mrb[0].mxu0
        %v606 = vadd.f32 %v537, %v605
        %v607 = vpop.f32.mrb[0].mxu0
        %608 = vdwg.mxu0
        %v609 = vmax.f32 %v606, 0.0
        %v610 = vld [vmem:[%s367] sm:$0xff]
        %v611 = vld [vmem:[%s367 + $0x8] sm:$0xff]
        %v612 = vld [vmem:[%s367 + $0x10] sm:$0xff]
        %v613 = vld [vmem:[%s367 + $0x18] sm:$0xff]
        %v614 = vld [vmem:[%s367 + $0x20] sm:$0xff]
        %v615 = vld [vmem:[%s367 + $0x28] sm:$0xff]
        %v616 = vld [vmem:[%s367 + $0x30] sm:$0xff]
        %v617 = vld [vmem:[%s367 + $0x38] sm:$0xff]
        %v618 = vld [vmem:[%s367 + $0x40] sm:$0xff]
        %v619 = vld [vmem:[%s367 + $0x48] sm:$0xff]
        %v620 = vld [vmem:[%s367 + $0x50] sm:$0xff]
        %v621 = vld [vmem:[%s367 + $0x58] sm:$0xff]
        %v622 = vld [vmem:[%s367 + $0x60] sm:$0xff]
        %v623 = vld [vmem:[%s367 + $0x68] sm:$0xff]
        %v624 = vld [vmem:[%s367 + $0x70] sm:$0xff]
        %v625 = vld [vmem:[%s367 + $0x78] sm:$0xff]
        %v626 = vld [vmem:[%s424] sm:$0x1]
        %v628 = vlaneseq
        %v629 = vshrl.u32 %v628, 7
        %v630 = vsub.s32 0, %v629
        %v631 = vrot.slane %v626, %v630
        %633 = vmatprep.subr.mxu0 0.0
        %634 = vmatpush1.msra.mxu0 %v610
        %635 = vmatprep.subr.mxu0 0.0
        %636 = vmatpush1.msra.mxu0 %v611
        %637 = vmatprep.subr.mxu0 0.0
        %638 = vmatpush1.msra.mxu0 %v612
        %639 = vmatprep.subr.mxu0 0.0
        %640 = vmatpush1.msra.mxu0 %v613
        %641 = vmatprep.subr.mxu0 0.0
        %642 = vmatpush1.msra.mxu0 %v614
        %643 = vmatprep.subr.mxu0 0.0
        %644 = vmatpush1.msra.mxu0 %v615
        %645 = vmatprep.subr.mxu0 0.0
        %646 = vmatpush1.msra.mxu0 %v616
        %647 = vmatprep.subr.mxu0 0.0
        %648 = vmatpush1.msra.mxu0 %v617
        %649 = vmatprep.subr.mxu0 0.0
        %650 = vmatpush1.msra.mxu0 %v618
        %651 = vmatprep.subr.mxu0 0.0
        %652 = vmatpush1.msra.mxu0 %v619
        %653 = vmatprep.subr.mxu0 0.0
        %654 = vmatpush1.msra.mxu0 %v620
        %655 = vmatprep.subr.mxu0 0.0
        %656 = vmatpush1.msra.mxu0 %v621
        %657 = vmatprep.subr.mxu0 0.0
        %658 = vmatpush1.msra.mxu0 %v622
        %659 = vmatprep.subr.mxu0 0.0
        %660 = vmatpush1.msra.mxu0 %v623
        %661 = vmatprep.subr.mxu0 0.0
        %662 = vmatpush1.msra.mxu0 %v624
        %663 = vmatprep.subr.mxu0 0.0
        %664 = vmatpush1.msra.mxu0 %v625
        %665 = vmatprep.subr.mxu0 0.0
        %666 = vmatpush1.msra.mxu0 0.0
        %667 = vmatprep.subr.mxu0 0.0
        %668 = vmatpush1.msra.mxu0 0.0
        %669 = vmatprep.subr.mxu0 0.0
        %670 = vmatpush1.msra.mxu0 0.0
        %671 = vmatprep.subr.mxu0 0.0
        %672 = vmatpush1.msra.mxu0 0.0
        %673 = vmatprep.subr.mxu0 0.0
        %674 = vmatpush1.msra.mxu0 0.0
        %675 = vmatprep.subr.mxu0 0.0
        %676 = vmatpush1.msra.mxu0 0.0
        %677 = vmatprep.subr.mxu0 0.0
        %678 = vmatpush1.msra.mxu0 0.0
        %679 = vmatprep.subr.mxu0 0.0
        %680 = vmatpush1.msra.mxu0 0.0
        %681 = vmatprep.subr.mxu0 0.0
        %682 = vmatpush1.msra.mxu0 0.0
        %683 = vmatprep.subr.mxu0 0.0
        %684 = vmatpush1.msra.mxu0 0.0
        %685 = vmatprep.subr.mxu0 0.0
        %686 = vmatpush1.msra.mxu0 0.0
        %687 = vmatprep.subr.mxu0 0.0
        %688 = vmatpush1.msra.mxu0 0.0
        %689 = vmatprep.subr.mxu0 0.0
        %690 = vmatpush1.msra.mxu0 0.0
        %691 = vmatprep.subr.mxu0 0.0
        %692 = vmatpush1.msra.mxu0 0.0
        %693 = vmatprep.subr.mxu0 0.0
        %694 = vmatpush1.msra.mxu0 0.0
        %695 = vmatprep.subr.mxu0 0.0
        %696 = vmatpush1.msra.mxu0 0.0
        %697 = vmatprep.mubr.f32.mxu0 0.0
        %698 = vmatmul.mubr.f32.gmra.mrb[0].mxu0 %v609
        %v699 = vpop.f32.mrb[0].mxu0
        %v700 = vadd.f32 %v631, %v699
        %v701 = vpop.f32.mrb[0].mxu0
        %702 = vdwg.mxu0
        %v703 = vmax.f32 %v700, 0.0
        %704 = vst [vmem:[%s428] sm:$0xff] %v703
        %p705 = scmp.lt.s32.totalorder %s25, 1
        %s706 = scalar_select %p705, %s25, 1
        %s707 = smul.addr %s706, 8
        %s708 = scalar_lea.vmem %s7, %s707
        // Predicated region
        $region65: #{rnd_forward.1} parent=47 // pred_check
          %p709 = pneg %p220
        $region66: #{rnd_forward.1} parent=47 // pred_check_branch
          %711 = sbr.rel (%p709) target = $region68
        $region67: #{rnd_forward.1} parent=47 // pred_region
          _
        $region68: #{rnd_forward.1} parent=47 // pred_fallthru
          _
      $region48: #{rnd_forward.1} parent=5 // pred_fallthru
        _
      %p712 = scmp.le.s32.totalorder 2, %s20
      // Predicated region
      $region69: #{rnd_forward.1} parent=5 // pred_check
        %p713 = pneg %p712
      $region70: #{rnd_forward.1} parent=5 // pred_check_branch
        %715 = sbr.rel (%p713) target = $region72
      $region71: #{rnd_forward.1} parent=5 // pred_region
        %s716 = ssub.s32 %s20, 2
        // Predicated region
        $region73: #{rnd_forward.1} parent=71 // pred_check
          %p717 = pneg %p226
        $region74: #{rnd_forward.1} parent=71 // pred_check_branch
          %719 = sbr.rel (%p717) target = $region76
        $region75: #{rnd_forward.1} parent=71 // pred_region
          %p720 = scmp.lt.s32.totalorder %s26, 1
          %s721 = scalar_select %p720, %s26, 1
          %s722 = smul.addr %s721, 8
          %s723 = scalar_lea.vmem %s7, %s722
        $region76: #{rnd_forward.1} parent=71 // pred_fallthru
          _
      $region72: #{rnd_forward.1} parent=5 // pred_fallthru
        _
    $region6: #{rnd_forward.1} parent=1 // loop_footer
      %s24 = sadd.s32 1, %s20
    $region7: #{rnd_forward.1} parent=1 // loop_footer_branch
      %19 = sbr.rel target = $region3
    $region8: #{rnd_forward.1} parent=1 // loop_exit
      _
    %724 = vsyncpa [#allocation3], 1
    %s725 = scalar_lea.sflag [#allocation3], 1
    %726 = vsyncpa %s725, 1
    %727 = vsyncpa [#allocation5], 1
    %s728 = scalar_lea.sflag [#allocation5], 1
    %729 = vsyncpa %s728, 1
    %730 = vsyncpa [#allocation8], 1
    %s731 = scalar_lea.sflag [#allocation8], 1
    %732 = vsyncpa %s731, 1

</llo_original>
